<compile_context>
chip_gen: v7x
topology: tpu7x:2x2x1
jax: 0.10.0
libtpu: 0.0.40
codegen_flags: <defaults>
</compile_context>

<pallas_src>
import math

import jax
import jax.numpy as jnp
import numpy as np
from jax.experimental import pallas as pl
from jax.experimental.pallas import tpu as pltpu


# ----------------------------------------------------------------------------
# Pallas kernel: attention core (scores + relative bias + mask + softmax + ctx)
# ----------------------------------------------------------------------------
def _rel_attn_kernel(q_ref, k_ref, v_ref, bias_ref, mask_ref, out_ref):
    # q_ref   : (HG, TQ, d_k) compute_dtype  -- this query tile, this head group
    # k_ref   : (HG, S,  d_k) compute_dtype
    # v_ref   : (HG, S,  d_k) compute_dtype
    # bias_ref: (HG, TQ, S)   compute_dtype  -- relative-position bias tile
    # mask_ref: (1, S)        float32        -- additive key-padding bias (0 / -1e30)
    # out_ref : (TQ, HG*d_k)  compute_dtype  -- lane-dense merged-head context
    HG, TQ, d_k = q_ref.shape

    # Head-batched scores on the MXU, f32 accumulation.
    s = jnp.einsum("hqd,hkd->hqk", q_ref[...], k_ref[...],
                   preferred_element_type=jnp.float32)            # (HG, TQ, S)
    s = s + bias_ref[...].astype(jnp.float32)
    s = s + mask_ref[...][:, None, :]                             # (1, 1, S) additive mask

    # Numerically-stable softmax in f32; reciprocal runs on the (idle) EUP slot.
    m = jnp.max(s, axis=-1, keepdims=True)
    e = jnp.exp(s - m)
    denom = jnp.sum(e, axis=-1, keepdims=True)
    p = e * pl.reciprocal(denom, approx=True)
    # TODO(synk): nn.Dropout on attention weights is identity in eval mode;
    # training-mode dropout is not implemented here.

    # Context (head-batched matmul), then merge heads into the lane-dense output
    # block with static per-head stores (robust lowering; when d_k is a multiple
    # of 128 these are aligned full-lane stores, and the HBM-side output block
    # is lane-dense in all cases).
    ctx = jnp.einsum("hqk,hkd->hqd", p.astype(v_ref.dtype), v_ref[...],
                     preferred_element_type=jnp.float32)          # (HG, TQ, d_k)
    for h in range(HG):
        out_ref[:, h * d_k:(h + 1) * d_k] = ctx[h].astype(out_ref.dtype)


# ----------------------------------------------------------------------------
# Wrapper: XLA projections + Pallas attention core + XLA output projection
# ----------------------------------------------------------------------------
def relative_mha(query, key, value, params, key_padding_mask=None, *,
                 num_heads, max_relative_position,
                 compute_dtype=jnp.float32, q_tile=128, heads_per_group=None):
    """query/key/value: (B, S, D).  key_padding_mask: (B, S) bool or None."""
    B, S, D = query.shape
    H = num_heads
    assert D % H == 0, "d_model must be divisible by num_heads"
    d_k = D // H

    # ---- Q/K/V projections: full-D (., D) @ (D, D) XLA GEMMs (MXU peak). ----
    scale = 1.0 / math.sqrt(d_k)
    q_p = query @ (params["wq"].T * scale) + params["bq"] * scale   # scale folded in
    k_p = key @ params["wk"].T + params["bk"]
    v_p = value @ params["wv"].T + params["bv"]

    def split_heads(x):                                   # (B,S,D) -> (B,H,S,d_k)
        return x.reshape(B, S, H, d_k).transpose(0, 2, 1, 3).astype(compute_dtype)

    qh, kh, vh = split_heads(q_p), split_heads(k_p), split_heads(v_p)

    # ---- Relative bias table lookup -> (H, S, S) (pure gather, plain JAX). ----
    rng = jnp.arange(S)
    rel_idx = jnp.clip(rng[:, None] - rng[None, :],
                       -max_relative_position + 1,
                       max_relative_position - 1) + max_relative_position - 1
    rel_bias = params["rel_bias_table"][:, rel_idx].astype(compute_dtype)   # (H, S, S)

    # ---- Additive key-padding mask (B, 1, S): 0 valid, -1e30 padded. ----
    # NOTE: fully masked rows get finite bias-shaped attention here, whereas the
    # reference produces NaN via -inf; intentional (NaN-robust) divergence.
    if key_padding_mask is None:
        mask_add = jnp.zeros((B, 1, S), jnp.float32)
    else:
        mask_add = jnp.where(key_padding_mask, jnp.float32(-1e30),
                             jnp.float32(0.0)).reshape(B, 1, S)

    # ---- Tiling. ----
    if S <= q_tile:
        TQ = S
    else:
        TQ = max(8, (min(q_tile, S) // 8) * 8)
    nq = pl.cdiv(S, TQ)

    if heads_per_group is None:
        heads_per_group = H
        if S >= 512:
            # Bound the (HG, TQ, S) f32 softmax intermediates while keeping the
            # merged output slab lane-aligned (HG * d_k multiple of 128).
            for g in range(1, H + 1):
                if H % g == 0 and (g * d_k) % 128 == 0:
                    heads_per_group = g
                    break
    HG = heads_per_group
    assert H % HG == 0
    HGD = HG * d_k
    assert HGD % 128 == 0 or HG == H, \
        "heads_per_group * d_k must be a multiple of 128 (or cover all heads)"
    n_hg = H // HG

    # ---- VMEM budget: real working set (with (8,128) padding), device-capped. ----
    ci = jnp.dtype(compute_dtype).itemsize

    def padded_bytes(shape, itemsize):
        s = list(shape)
        s[-1] = -(-s[-1] // 128) * 128
        if len(s) >= 2:
            s[-2] = -(-s[-2] // 8) * 8
        n = 1
        for d in s:
            n *= d
        return n * itemsize

    working = (
        2 * padded_bytes((HG, TQ, d_k), ci)          # q block (double-buffered)
        + 2 * 2 * padded_bytes((HG, S, d_k), ci)     # k, v blocks
        + 2 * padded_bytes((HG, TQ, S), ci)          # relative-bias tile
        + 2 * padded_bytes((1, S), 4)                # padding-mask row
        + 2 * padded_bytes((TQ, HGD), ci)            # output block
        + 3 * padded_bytes((HG, TQ, S), 4)           # scores / exp / attn f32 temps
    )
    try:
        vmem_cap = pltpu.get_tpu_info().vmem_capacity_bytes
    except Exception:
        vmem_cap = 64 * 2 ** 20                      # conservative fallback (v7x)
    vmem_limit = int(min(int(0.8 * vmem_cap), max(32 * 2 ** 20, int(1.5 * working))))

    # ---- BlockSpecs.  Grid = (query_tile, head_group, batch); batch innermost
    # so the bias block index is constant across it (re-DMA skipped). ----
    sq = pl.Squeezed()
    q_spec = pl.BlockSpec((sq, HG, TQ, d_k), lambda qi, hg, b: (b, hg, qi, 0))
    kv_spec = pl.BlockSpec((sq, HG, S, d_k), lambda qi, hg, b: (b, hg, 0, 0))
    bias_spec = pl.BlockSpec((HG, TQ, S), lambda qi, hg, b: (hg, qi, 0))
    mask_spec = pl.BlockSpec((sq, 1, S), lambda qi, hg, b: (b, 0, 0))
    out_spec = pl.BlockSpec((sq, TQ, HGD), lambda qi, hg, b: (b, qi, hg))

    ctx = pl.pallas_call(
        _rel_attn_kernel,
        out_shape=jax.ShapeDtypeStruct((B, S, D), compute_dtype),
        grid=(nq, n_hg, B),
        in_specs=[q_spec, kv_spec, kv_spec, bias_spec, mask_spec],
        out_specs=out_spec,
        compiler_params=pltpu.CompilerParams(
            # Outer two axes parallel (feeds both v7x TensorCores even if B == 1);
            # batch kept sequential/innermost for the relative-bias reuse.
            dimension_semantics=("parallel", "parallel", "arbitrary"),
            vmem_limit_bytes=vmem_limit,
        ),
    )(qh, kh, vh, rel_bias, mask_add)

    # ---- Output projection: full-D XLA GEMM on the lane-dense merged context. ----
    out = ctx.astype(jnp.float32) @ params["wo"].T + params["bo"]
    return out


# ----------------------------------------------------------------------------
# Pure-JAX reference (mirrors the PyTorch forward, eval mode)
# ----------------------------------------------------------------------------
def reference(query, key, value, params, key_padding_mask,
              *, num_heads, max_relative_position):
    B, S, D = query.shape
    d_k = D // num_heads

    def lin(x, w, b):
        return x @ w.T + b

    Q = lin(query, params["wq"], params["bq"]).reshape(B, S, num_heads, d_k).transpose(0, 2, 1, 3)
    K = lin(key, params["wk"], params["bk"]).reshape(B, S, num_heads, d_k).transpose(0, 2, 1, 3)
    V = lin(value, params["wv"], params["bv"]).reshape(B, S, num_heads, d_k).transpose(0, 2, 1, 3)

    scores = jnp.einsum("bhqd,bhkd->bhqk", Q, K) / math.sqrt(d_k)

    rng = jnp.arange(S)
    rel = jnp.clip(rng[:, None] - rng[None, :],
                   -max_relative_position + 1,
                   max_relative_position - 1) + max_relative_position - 1
    bias = params["rel_bias_table"][:, rel]               # (H, S, S)
    scores = scores + bias[None]

    if key_padding_mask is not None:
        scores = jnp.where(key_padding_mask[:, None, None, :], -jnp.inf, scores)

    attn = jax.nn.softmax(scores, axis=-1)
    out = jnp.einsum("bhqk,bhkd->bhqd", attn, V)
    out = out.transpose(0, 2, 1, 3).reshape(B, S, D)
    return lin(out, params["wo"], params["bo"])


# ----------------------------------------------------------------------------
# Main
# ----------------------------------------------------------------------------
if __name__ == "__main__":
    B, S, D = 2, 8, 32
    num_heads = 4
    max_rel = 64

    key0 = jax.random.PRNGKey(0)
    keys = jax.random.split(key0, 16)

    def xavier(k, shape):
        fan_in, fan_out = shape[1], shape[0]
        limit = math.sqrt(6.0 / (fan_in + fan_out))
        return jax.random.uniform(k, shape, jnp.float32, -limit, limit)

    params = {
        "wq": xavier(keys[0], (D, D)), "bq": jax.random.normal(keys[1], (D,)) * 0.02,
        "wk": xavier(keys[2], (D, D)), "bk": jax.random.normal(keys[3], (D,)) * 0.02,
        "wv": xavier(keys[4], (D, D)), "bv": jax.random.normal(keys[5], (D,)) * 0.02,
        "wo": xavier(keys[6], (D, D)), "bo": jax.random.normal(keys[7], (D,)) * 0.02,
        "rel_bias_table": xavier(keys[8], (num_heads, 2 * max_rel - 1)),
    }

    query = jax.random.normal(keys[9], (B, S, D), jnp.float32)
    key_t = jax.random.normal(keys[10], (B, S, D), jnp.float32)
    value = jax.random.normal(keys[11], (B, S, D), jnp.float32)

    # Pad the last two key positions of batch element 1.
    key_padding_mask = jnp.zeros((B, S), dtype=bool).at[1, -2:].set(True)

    # f32 compute for the correctness demo; use compute_dtype=jnp.bfloat16 on real shapes.
    out = relative_mha(query, key_t, value, params, key_padding_mask,
                       num_heads=num_heads, max_relative_position=max_rel,
                       compute_dtype=jnp.float32)
    out = jax.block_until_ready(out)

    ref = reference(query, key_t, value, params, key_padding_mask,
                    num_heads=num_heads, max_relative_position=max_rel)

    assert out.shape == (B, S, D)
    # Tolerance loosened slightly vs exact f32: the softmax divide uses the EUP
    # approximate reciprocal (pl.reciprocal(..., approx=True)).
    np.testing.assert_allclose(np.asarray(out), np.asarray(ref), rtol=5e-3, atol=5e-3)
    print("KERNEL_OK")
</pallas_src>

<mosaic_0001>
module attributes {stable_mosaic.version = 11 : i64} {
  func.func @_rel_attn_kernel(%arg0: i32, %arg1: i32, %arg2: i32, %arg3: memref<1x4x8x8xf32, #tpu.memory_space<vmem>>, %arg4: memref<1x4x8x8xf32, #tpu.memory_space<vmem>>, %arg5: memref<1x4x8x8xf32, #tpu.memory_space<vmem>>, %arg6: memref<4x8x8xf32, #tpu.memory_space<vmem>>, %arg7: memref<1x1x8xf32, #tpu.memory_space<vmem>>, %arg8: memref<1x8x32xf32, #tpu.memory_space<vmem>>) attributes {dimension_semantics = [#tpu.dimension_semantics<parallel>, #tpu.dimension_semantics<parallel>, #tpu.dimension_semantics<arbitrary>], iteration_bounds = array<i64: 1, 1, 2>, scalar_prefetch = 0 : i64, scratch_operands = 0 : i64, tpu.core_type = #tpu.core_type<tc>, window_params = [{transform_indices = @transform_0, window_bounds = array<i64: 1, 4, 8, 8>}, {transform_indices = @transform_1, window_bounds = array<i64: 1, 4, 8, 8>}, {transform_indices = @transform_2, window_bounds = array<i64: 1, 4, 8, 8>}, {transform_indices = @transform_3, window_bounds = array<i64: 4, 8, 8>}, {transform_indices = @transform_4, window_bounds = array<i64: 1, 1, 8>}, {transform_indices = @transform_5, window_bounds = array<i64: 1, 8, 32>}]} {
    %c0 = arith.constant 0 : index
    %c0_0 = arith.constant 0 : index
    %c0_1 = arith.constant 0 : index
    %c0_2 = arith.constant 0 : index
    %0 = vector.load %arg3[%c0, %c0_0, %c0_1, %c0_2] : memref<1x4x8x8xf32, #tpu.memory_space<vmem>>, vector<1x4x8x8xf32>
    %1 = vector.shape_cast %0 : vector<1x4x8x8xf32> to vector<4x8x8xf32>
    %c0_3 = arith.constant 0 : index
    %c0_4 = arith.constant 0 : index
    %c0_5 = arith.constant 0 : index
    %c0_6 = arith.constant 0 : index
    %2 = vector.load %arg4[%c0_3, %c0_4, %c0_5, %c0_6] : memref<1x4x8x8xf32, #tpu.memory_space<vmem>>, vector<1x4x8x8xf32>
    %3 = vector.shape_cast %2 : vector<1x4x8x8xf32> to vector<4x8x8xf32>
    "tpu.trace_start"() <{level = 10 : i32, message = "hqd,hkd->hqk"}> : () -> ()
    %cst = arith.constant dense<0.000000e+00> : vector<4x8x8xf32>
    %4 = tpu.matmul %1, %3, %cst {dimension_numbers = #tpu.dot_dimension_numbers<[2], [2], [1], [1], [0, 0, 0, 1, 1, 1], [0], [0]>} : vector<4x8x8xf32>, vector<4x8x8xf32>, vector<4x8x8xf32> -> vector<4x8x8xf32>
    "tpu.trace_stop"() : () -> ()
    %c0_7 = arith.constant 0 : index
    %c0_8 = arith.constant 0 : index
    %c0_9 = arith.constant 0 : index
    %5 = vector.load %arg6[%c0_7, %c0_8, %c0_9] : memref<4x8x8xf32, #tpu.memory_space<vmem>>, vector<4x8x8xf32>
    %6 = arith.addf %4, %5 : vector<4x8x8xf32>
    %c0_10 = arith.constant 0 : index
    %c0_11 = arith.constant 0 : index
    %c0_12 = arith.constant 0 : index
    %7 = vector.load %arg7[%c0_10, %c0_11, %c0_12] : memref<1x1x8xf32, #tpu.memory_space<vmem>>, vector<1x1x8xf32>
    %8 = vector.shape_cast %7 : vector<1x1x8xf32> to vector<1x8xf32>
    %9 = vector.shape_cast %8 : vector<1x8xf32> to vector<1x1x8xf32>
    %10 = vector.broadcast %9 : vector<1x1x8xf32> to vector<4x8x8xf32>
    %11 = arith.addf %6, %10 : vector<4x8x8xf32>
    %cst_13 = arith.constant dense<0xFF800000> : vector<4x8xf32>
    %12 = vector.multi_reduction <maximumf>, %11, %cst_13 [2] : vector<4x8x8xf32> to vector<4x8xf32>
    %13 = vector.shape_cast %12 : vector<4x8xf32> to vector<4x8x1xf32>
    %14 = vector.broadcast %13 : vector<4x8x1xf32> to vector<4x8x8xf32>
    %15 = arith.subf %11, %14 : vector<4x8x8xf32>
    %16 = math.exp %15 : vector<4x8x8xf32>
    %cst_14 = arith.constant dense<0.000000e+00> : vector<4x8xf32>
    %17 = vector.multi_reduction <add>, %16, %cst_14 [2] : vector<4x8x8xf32> to vector<4x8xf32>
    %18 = vector.shape_cast %17 : vector<4x8xf32> to vector<4x8x1xf32>
    %19 = tpu.reciprocal %18 {approx = true} : vector<4x8x1xf32> -> vector<4x8x1xf32>
    %20 = vector.broadcast %19 : vector<4x8x1xf32> to vector<4x8x8xf32>
    %21 = arith.mulf %16, %20 : vector<4x8x8xf32>
    %c0_15 = arith.constant 0 : index
    %c0_16 = arith.constant 0 : index
    %c0_17 = arith.constant 0 : index
    %c0_18 = arith.constant 0 : index
    %22 = vector.load %arg5[%c0_15, %c0_16, %c0_17, %c0_18] : memref<1x4x8x8xf32, #tpu.memory_space<vmem>>, vector<1x4x8x8xf32>
    %23 = vector.shape_cast %22 : vector<1x4x8x8xf32> to vector<4x8x8xf32>
    "tpu.trace_start"() <{level = 10 : i32, message = "hqk,hkd->hqd"}> : () -> ()
    %cst_19 = arith.constant dense<0.000000e+00> : vector<4x8x8xf32>
    %24 = tpu.matmul %21, %23, %cst_19 {dimension_numbers = #tpu.dot_dimension_numbers<[2], [1], [1], [2], [0, 0, 0, 1, 1, 2], [0], [0]>} : vector<4x8x8xf32>, vector<4x8x8xf32>, vector<4x8x8xf32> -> vector<4x8x8xf32>
    "tpu.trace_stop"() : () -> ()
    %25 = vector.extract_strided_slice %24 {offsets = [0, 0, 0], sizes = [1, 8, 8], strides = [1, 1, 1]} : vector<4x8x8xf32> to vector<1x8x8xf32>
    %26 = vector.shape_cast %25 : vector<1x8x8xf32> to vector<8x8xf32>
    %c0_20 = arith.constant 0 : index
    %c0_21 = arith.constant 0 : index
    %c0_22 = arith.constant 0 : index
    %27 = vector.load %arg8[%c0_20, %c0_21, %c0_22] : memref<1x8x32xf32, #tpu.memory_space<vmem>>, vector<1x8x8xf32>
    %28 = vector.shape_cast %27 : vector<1x8x8xf32> to vector<8x8xf32>
    %29 = vector.shape_cast %26 : vector<8x8xf32> to vector<1x8x8xf32>
    tpu.vector_store %arg8[%c0_20, %c0_21, %c0_22], %29 {strides = array<i32>} : memref<1x8x32xf32, #tpu.memory_space<vmem>>, vector<1x8x8xf32>,
    %30 = vector.extract_strided_slice %24 {offsets = [1, 0, 0], sizes = [1, 8, 8], strides = [1, 1, 1]} : vector<4x8x8xf32> to vector<1x8x8xf32>
    %31 = vector.shape_cast %30 : vector<1x8x8xf32> to vector<8x8xf32>
    %c0_23 = arith.constant 0 : index
    %c0_24 = arith.constant 0 : index
    %c8 = arith.constant 8 : index
    %32 = vector.load %arg8[%c0_23, %c0_24, %c8] : memref<1x8x32xf32, #tpu.memory_space<vmem>>, vector<1x8x8xf32>
    %33 = vector.shape_cast %32 : vector<1x8x8xf32> to vector<8x8xf32>
    %34 = vector.shape_cast %31 : vector<8x8xf32> to vector<1x8x8xf32>
    tpu.vector_store %arg8[%c0_23, %c0_24, %c8], %34 {strides = array<i32>} : memref<1x8x32xf32, #tpu.memory_space<vmem>>, vector<1x8x8xf32>,
    %35 = vector.extract_strided_slice %24 {offsets = [2, 0, 0], sizes = [1, 8, 8], strides = [1, 1, 1]} : vector<4x8x8xf32> to vector<1x8x8xf32>
    %36 = vector.shape_cast %35 : vector<1x8x8xf32> to vector<8x8xf32>
    %c0_25 = arith.constant 0 : index
    %c0_26 = arith.constant 0 : index
    %c16 = arith.constant 16 : index
    %37 = vector.load %arg8[%c0_25, %c0_26, %c16] : memref<1x8x32xf32, #tpu.memory_space<vmem>>, vector<1x8x8xf32>
    %38 = vector.shape_cast %37 : vector<1x8x8xf32> to vector<8x8xf32>
    %39 = vector.shape_cast %36 : vector<8x8xf32> to vector<1x8x8xf32>
    tpu.vector_store %arg8[%c0_25, %c0_26, %c16], %39 {strides = array<i32>} : memref<1x8x32xf32, #tpu.memory_space<vmem>>, vector<1x8x8xf32>,
    %40 = vector.extract_strided_slice %24 {offsets = [3, 0, 0], sizes = [1, 8, 8], strides = [1, 1, 1]} : vector<4x8x8xf32> to vector<1x8x8xf32>
    %41 = vector.shape_cast %40 : vector<1x8x8xf32> to vector<8x8xf32>
    %c0_27 = arith.constant 0 : index
    %c0_28 = arith.constant 0 : index
    %c24 = arith.constant 24 : index
    %42 = vector.load %arg8[%c0_27, %c0_28, %c24] : memref<1x8x32xf32, #tpu.memory_space<vmem>>, vector<1x8x8xf32>
    %43 = vector.shape_cast %42 : vector<1x8x8xf32> to vector<8x8xf32>
    %44 = vector.shape_cast %41 : vector<8x8xf32> to vector<1x8x8xf32>
    tpu.vector_store %arg8[%c0_27, %c0_28, %c24], %44 {strides = array<i32>} : memref<1x8x32xf32, #tpu.memory_space<vmem>>, vector<1x8x8xf32>,
    return
  }
  func.func @transform_0(%arg0: i32, %arg1: i32, %arg2: i32) -> (i32, i32, i32, i32) {
    %c0_i32 = arith.constant 0 : i32
    %c0_i32_0 = arith.constant 0 : i32
    return %arg2, %arg1, %arg0, %c0_i32 : i32, i32, i32, i32
  }
  func.func @transform_1(%arg0: i32, %arg1: i32, %arg2: i32) -> (i32, i32, i32, i32) {
    %c0_i32 = arith.constant 0 : i32
    %c0_i32_0 = arith.constant 0 : i32
    %c0_i32_1 = arith.constant 0 : i32
    return %arg2, %arg1, %c0_i32, %c0_i32_0 : i32, i32, i32, i32
  }
  func.func @transform_2(%arg0: i32, %arg1: i32, %arg2: i32) -> (i32, i32, i32, i32) {
    %c0_i32 = arith.constant 0 : i32
    %c0_i32_0 = arith.constant 0 : i32
    %c0_i32_1 = arith.constant 0 : i32
    return %arg2, %arg1, %c0_i32, %c0_i32_0 : i32, i32, i32, i32
  }
  func.func @transform_3(%arg0: i32, %arg1: i32, %arg2: i32) -> (i32, i32, i32) {
    %c0_i32 = arith.constant 0 : i32
    %c0_i32_0 = arith.constant 0 : i32
    return %arg1, %arg0, %c0_i32 : i32, i32, i32
  }
  func.func @transform_4(%arg0: i32, %arg1: i32, %arg2: i32) -> (i32, i32, i32) {
    %c0_i32 = arith.constant 0 : i32
    %c0_i32_0 = arith.constant 0 : i32
    %c0_i32_1 = arith.constant 0 : i32
    return %arg2, %c0_i32, %c0_i32_0 : i32, i32, i32
  }
  func.func @transform_5(%arg0: i32, %arg1: i32, %arg2: i32) -> (i32, i32, i32) {
    %c0_i32 = arith.constant 0 : i32
    return %arg2, %arg0, %arg1 : i32, i32, i32
  }
}

</mosaic_0001>

<llo_original>
// kernel: tpu_custom_call.1
$region0: #{tpu_custom_call.1}
  #allocation0 [shape = 'u32[]', space=smem, size = 0x4, offset = 0x4, fixed_abs, tag = 'smem constant byte address 0x4 - core index']
  #allocation1 [shape = 'u32[144,128]{1,0:T(1,128)}', space=vmem, size = 0x12000, scoped, tag = 'internal scratch']
  %s0 = inlined_call_operand.hbm [shape: f32[2,4,8,8], index: 0, kind: input, shape index: {}]
  %s1 = inlined_call_operand.hbm [shape: f32[2,4,8,8], index: 1, kind: input, shape index: {}]
  %s2 = inlined_call_operand.hbm [shape: f32[2,4,8,8], index: 2, kind: input, shape index: {}]
  %s3 = inlined_call_operand.hbm [shape: f32[4,8,8], index: 3, kind: input, shape index: {}]
  %s4 = inlined_call_operand.vmem [shape: f32[2,1,8], index: 4, kind: input, shape index: {}]
  %s5 = inlined_call_operand.hbm [shape: f32[2,8,32], index: 5, kind: output, shape index: {}]
  %s6 = sld [smem:[#allocation0]]
  $region69: #{tpu_custom_call.1} parent=0
    _
  %s8 = ssub.s32 1, %s6
  %s9 = scalar_select 0, %s8, %s6
  $region1: #{tpu_custom_call.1} parent=0
    #allocation2 [shape = 'u8[32768]{0}', space=vmem, size = 0x8000, scoped, tag = 'input window, operand 0']
    #allocation3 [shape = 's32[2]{0}', space=sflag, size = 0x8, scoped, tag = 'scoped memory for tpu_custom_call.1']
    #allocation4 [shape = 's32[2]{0}', space=sflag, size = 0x8, scoped, tag = 'scoped memory for tpu_custom_call.1']
    #allocation5 [shape = 'u8[32768]{0}', space=vmem, size = 0x8000, scoped, tag = 'input window, operand 1']
    #allocation6 [shape = 's32[2]{0}', space=sflag, size = 0x8, scoped, tag = 'scoped memory for tpu_custom_call.1']
    #allocation7 [shape = 'u8[32768]{0}', space=vmem, size = 0x8000, scoped, tag = 'input window, operand 2']
    #allocation8 [shape = 'u8[16384]{0}', space=vmem, size = 0x4000, scoped, tag = 'input window, operand 3, single buffered']
    #allocation9 [shape = 's32[1]{0}', space=sflag, size = 0x4, scoped, tag = 'scoped memory for tpu_custom_call.1']
    #allocation10 [shape = 'u8[8192]{0}', space=vmem, size = 0x2000, scoped, tag = 'output window, operand 0']
    %10 = vsyncpa [#allocation3], 0
    %s11 = scalar_lea.sflag [#allocation3], 1
    %12 = vsyncpa %s11, 0
    %13 = vsyncpa [#allocation6], 0
    %s14 = scalar_lea.sflag [#allocation6], 1
    %15 = vsyncpa %s14, 0
    %16 = vsyncpa [#allocation9], 0
    %17 = vsyncpa [#allocation4], 0
    %s18 = scalar_lea.sflag [#allocation4], 1
    %19 = vsyncpa %s18, 0
    loop: start=0, step=1, limit=4
    $region2: #{tpu_custom_call.1} parent=1 // loop_pre_header
      _
    $region3: #{tpu_custom_call.1} parent=1 // loop_header
      %s21 = sphi 0, %s25
      %p22 = scmp.ge.s32.totalorder %s21, 4
      %s28 = sphi 0, %s47
      %s29 = sphi 0, %s43
      %s30 = sphi 0, %s39
      %s31 = sphi 0, %s28
      %s32 = sphi 0, %s29
      %s33 = sphi 0, %s30
      %s34 = sphi 0, %s31
      %s35 = sphi 0, %s32
      %s36 = sphi 0, %s33
      %s54 = sphi 0, %s56
      %s57 = sphi 0, %s54
      %s58 = sphi 0, %s57
      %s74 = sphi 0, %s58
      %s82 = sphi 0, %s84
      %s85 = sphi 0, %s82
      %s86 = sphi 0, %s85
      %s102 = sphi 0, %s86
      %s110 = sphi 0, %s112
      %s113 = sphi 0, %s110
      %s114 = sphi 0, %s113
      %s130 = sphi 0, %s114
      %s138 = sphi 0, %s140
      %s141 = sphi 0, %s138
      %s142 = sphi 0, %s141
      %s158 = sphi 0, %s142
      %s164 = sphi 0, %s166
      %s167 = sphi 0, %s164
      %s168 = sphi 0, %s167
      %s184 = sphi 0, %s168
      %s194 = sphi 0, %s196
      %s197 = sphi 0, %s194
      %s198 = sphi 0, %s197
      %s214 = sphi 0, %s198
    $region4: #{tpu_custom_call.1} parent=1 // loop_header_branch
      %24 = sbr.rel (%p22) target = $region8
    $region5: #{tpu_custom_call.1} parent=1 // loop_body
      %s26 = ssub.s32 %s21, 1
      %s27 = ssub.s32 %s21, 2
      %s37 = sadd.s32 1, %s30
      %p38 = scmp.ge.s32.totalorder %s37, 2
      %s39 = scalar_select %p38, 0, %s37
      %s40 = sadd.s32 1, %s29
      %s41 = scalar_select %p38, %s40, %s29
      %p42 = scmp.ge.s32.totalorder %s41, 1
      %s43 = scalar_select %p42, 0, %s41
      %s44 = sadd.s32 1, %s28
      %s45 = scalar_select %p42, %s44, %s28
      %p46 = scmp.ge.s32.totalorder %s45, 1
      %s47 = scalar_select %p46, 0, %s45
      %s48 = ssub.s32 %s30, %s39
      %s49 = ssub.s32 %s29, %s43
      %s50 = sor.u32 %s48, %s49
      %s51 = ssub.s32 %s28, %s47
      %s52 = sor.u32 %s50, %s51
      %p53 = scmp.eq.s32.totalorder %s52, 0
      %s55 = sadd.s32 %s54, 1
      %s56 = scalar_select %p53, %s54, %s55
      %p59 = pneg %p53
      %p60 = scmp.eq.s32.totalorder %s21, 1
      %p61 = por %p59, %p60
      %p62 = scmp.ne.s32.totalorder %s54, %s57
      %p63 = scmp.eq.s32.totalorder %s21, 0
      %p64 = por %p62, %p63
      %p65 = scmp.ne.s32.totalorder %s54, %s57
      %p66 = scmp.eq.s32.totalorder %s26, 1
      %p67 = por %p65, %p66
      %p68 = scmp.ne.s32.totalorder %s57, %s58
      %p69 = scmp.eq.s32.totalorder %s26, 0
      %p70 = por %p68, %p69
      %p71 = scmp.ne.s32.totalorder %s57, %s58
      %p72 = scmp.eq.s32.totalorder %s27, 1
      %p73 = por %p71, %p72
      %p75 = scmp.ne.s32.totalorder %s58, %s74
      %p76 = scmp.eq.s32.totalorder %s27, 0
      %p77 = por %p75, %p76
      %s78 = ssub.s32 %s30, %s39
      %s79 = ssub.s32 %s29, %s43
      %s80 = sor.u32 %s78, %s79
      %p81 = scmp.eq.s32.totalorder %s80, 0
      %s83 = sadd.s32 %s82, 1
      %s84 = scalar_select %p81, %s82, %s83
      %p87 = pneg %p81
      %p88 = scmp.eq.s32.totalorder %s21, 1
      %p89 = por %p87, %p88
      %p90 = scmp.ne.s32.totalorder %s82, %s85
      %p91 = scmp.eq.s32.totalorder %s21, 0
      %p92 = por %p90, %p91
      %p93 = scmp.ne.s32.totalorder %s82, %s85
      %p94 = scmp.eq.s32.totalorder %s26, 1
      %p95 = por %p93, %p94
      %p96 = scmp.ne.s32.totalorder %s85, %s86
      %p97 = scmp.eq.s32.totalorder %s26, 0
      %p98 = por %p96, %p97
      %p99 = scmp.ne.s32.totalorder %s85, %s86
      %p100 = scmp.eq.s32.totalorder %s27, 1
      %p101 = por %p99, %p100
      %p103 = scmp.ne.s32.totalorder %s86, %s102
      %p104 = scmp.eq.s32.totalorder %s27, 0
      %p105 = por %p103, %p104
      %s106 = ssub.s32 %s30, %s39
      %s107 = ssub.s32 %s29, %s43
      %s108 = sor.u32 %s106, %s107
      %p109 = scmp.eq.s32.totalorder %s108, 0
      %s111 = sadd.s32 %s110, 1
      %s112 = scalar_select %p109, %s110, %s111
      %p115 = pneg %p109
      %p116 = scmp.eq.s32.totalorder %s21, 1
      %p117 = por %p115, %p116
      %p118 = scmp.ne.s32.totalorder %s110, %s113
      %p119 = scmp.eq.s32.totalorder %s21, 0
      %p120 = por %p118, %p119
      %p121 = scmp.ne.s32.totalorder %s110, %s113
      %p122 = scmp.eq.s32.totalorder %s26, 1
      %p123 = por %p121, %p122
      %p124 = scmp.ne.s32.totalorder %s113, %s114
      %p125 = scmp.eq.s32.totalorder %s26, 0
      %p126 = por %p124, %p125
      %p127 = scmp.ne.s32.totalorder %s113, %s114
      %p128 = scmp.eq.s32.totalorder %s27, 1
      %p129 = por %p127, %p128
      %p131 = scmp.ne.s32.totalorder %s114, %s130
      %p132 = scmp.eq.s32.totalorder %s27, 0
      %p133 = por %p131, %p132
      %s134 = ssub.s32 %s29, %s43
      %s135 = ssub.s32 %s28, %s47
      %s136 = sor.u32 %s134, %s135
      %p137 = scmp.eq.s32.totalorder %s136, 0
      %s139 = sadd.s32 %s138, 1
      %s140 = scalar_select %p137, %s138, %s139
      %p143 = pneg %p137
      %p144 = scmp.eq.s32.totalorder %s21, 1
      %p145 = por %p143, %p144
      %p146 = scmp.ne.s32.totalorder %s138, %s141
      %p147 = scmp.eq.s32.totalorder %s21, 0
      %p148 = por %p146, %p147
      %p149 = scmp.ne.s32.totalorder %s138, %s141
      %p150 = scmp.eq.s32.totalorder %s26, 1
      %p151 = por %p149, %p150
      %p152 = scmp.ne.s32.totalorder %s141, %s142
      %p153 = scmp.eq.s32.totalorder %s26, 0
      %p154 = por %p152, %p153
      %p155 = scmp.ne.s32.totalorder %s141, %s142
      %p156 = scmp.eq.s32.totalorder %s27, 1
      %p157 = por %p155, %p156
      %p159 = scmp.ne.s32.totalorder %s142, %s158
      %p160 = scmp.eq.s32.totalorder %s27, 0
      %p161 = por %p159, %p160
      %s162 = ssub.s32 %s30, %s39
      %p163 = scmp.eq.s32.totalorder %s162, 0
      %s165 = sadd.s32 %s164, 1
      %s166 = scalar_select %p163, %s164, %s165
      %p169 = pneg %p163
      %p170 = scmp.eq.s32.totalorder %s21, 1
      %p171 = por %p169, %p170
      %p172 = scmp.ne.s32.totalorder %s164, %s167
      %p173 = scmp.eq.s32.totalorder %s21, 0
      %p174 = por %p172, %p173
      %p175 = scmp.ne.s32.totalorder %s164, %s167
      %p176 = scmp.eq.s32.totalorder %s26, 1
      %p177 = por %p175, %p176
      %p178 = scmp.ne.s32.totalorder %s167, %s168
      %p179 = scmp.eq.s32.totalorder %s26, 0
      %p180 = por %p178, %p179
      %p181 = scmp.ne.s32.totalorder %s167, %s168
      %p182 = scmp.eq.s32.totalorder %s27, 1
      %p183 = por %p181, %p182
      %p185 = scmp.ne.s32.totalorder %s168, %s184
      %p186 = scmp.eq.s32.totalorder %s27, 0
      %p187 = por %p185, %p186
      %s188 = ssub.s32 %s30, %s39
      %s189 = ssub.s32 %s28, %s47
      %s190 = sor.u32 %s188, %s189
      %s191 = ssub.s32 %s29, %s43
      %s192 = sor.u32 %s190, %s191
      %p193 = scmp.eq.s32.totalorder %s192, 0
      %s195 = sadd.s32 %s194, 1
      %s196 = scalar_select %p193, %s194, %s195
      %p199 = pneg %p193
      %p200 = scmp.eq.s32.totalorder %s21, 1
      %p201 = por %p199, %p200
      %p202 = scmp.ne.s32.totalorder %s194, %s197
      %p203 = scmp.eq.s32.totalorder %s21, 0
      %p204 = por %p202, %p203
      %p205 = scmp.ne.s32.totalorder %s194, %s197
      %p206 = scmp.eq.s32.totalorder %s26, 1
      %p207 = por %p205, %p206
      %p208 = scmp.ne.s32.totalorder %s197, %s198
      %p209 = scmp.eq.s32.totalorder %s26, 0
      %p210 = por %p208, %p209
      %p211 = scmp.ne.s32.totalorder %s197, %s198
      %p212 = scmp.eq.s32.totalorder %s27, 1
      %p213 = por %p211, %p212
      %p215 = scmp.ne.s32.totalorder %s198, %s214
      %p216 = scmp.eq.s32.totalorder %s27, 0
      %p217 = por %p215, %p216
      %p218 = scmp.le.s32.totalorder 1, %s21
      %p219 = scmp.lt.s32.totalorder %s21, 3
      %p220 = pnand %p218, %p219
      %p221 = pneg %p220
      // Predicated region
      $region9: #{tpu_custom_call.1} parent=5 // pred_check
        _
      $region10: #{tpu_custom_call.1} parent=5 // pred_check_branch
        %223 = sbr.rel (%p220) target = $region12
      $region11: #{tpu_custom_call.1} parent=5 // pred_region
        %s224 = ssub.s32 %s21, 1
        // Predicated region
        $region13: #{tpu_custom_call.1} parent=11 // pred_check
          %p225 = pneg %p154
        $region14: #{tpu_custom_call.1} parent=11 // pred_check_branch
          %227 = sbr.rel (%p225) target = $region16
        $region15: #{tpu_custom_call.1} parent=11 // pred_region
          %s228 = smul.u32 4, %s32
          %s230 = ssub.s32 512, 512
          %231 = vsyncadd [#allocation9], %s230
          %s232 = sadd.s32 %s31, %s228
          %s233 = smul.addr %s232, 128
          %s234 = scalar_lea.hbm %s3, %s233
          %s235 = sshll.u32 [#allocation8], 4
          %s236 = int_to_ptr.vmem [resolvable:$true] %s235
          %241 = dma.hbm_to_vmem [thread:$0]  %s234, 512, %s236, [#allocation9], 128, 128, 8
        $region16: #{tpu_custom_call.1} parent=11 // pred_fallthru
          _
      $region12: #{tpu_custom_call.1} parent=5 // pred_fallthru
        _
      %p242 = scmp.lt.s32.totalorder %s21, 2
      // Predicated region
      $region17: #{tpu_custom_call.1} parent=5 // pred_check
        %p243 = pneg %p242
      $region18: #{tpu_custom_call.1} parent=5 // pred_check_branch
        %245 = sbr.rel (%p243) target = $region20
      $region19: #{tpu_custom_call.1} parent=5 // pred_region
        // Predicated region
        $region21: #{tpu_custom_call.1} parent=19 // pred_check
          %p246 = pneg %p64
        $region22: #{tpu_custom_call.1} parent=19 // pred_check_branch
          %248 = sbr.rel (%p246) target = $region24
        $region23: #{tpu_custom_call.1} parent=19 // pred_region
          %s249 = sand.u32 %s54, 1
          %s250 = scalar_lea.sflag [#allocation3], %s249
          %s251 = sand.u32 %s54, 1
          %s252 = smul.addr %s251, 32
          %s253 = scalar_lea.vmem [#allocation2], %s252
          %s254 = smul.u32 4, %s29
          %s256 = ssub.s32 512, 512
          %257 = vsyncadd %s250, %s256
          %s258 = sadd.s32 %s28, %s254
          %s259 = smul.addr %s30, 4
          %s260 = sadd.s32 %s258, %s259
          %s261 = smul.addr %s260, 128
          %s262 = scalar_lea.hbm %s0, %s261
          %s263 = sshll.u32 %s253, 4
          %s264 = int_to_ptr.vmem [resolvable:$true] %s263
          %269 = dma.hbm_to_vmem [thread:$0]  %s262, 512, %s264, %s250, 128, 128, 8
        $region24: #{tpu_custom_call.1} parent=19 // pred_fallthru
          _
        // Predicated region
        $region25: #{tpu_custom_call.1} parent=19 // pred_check
          %p270 = pneg %p92
        $region26: #{tpu_custom_call.1} parent=19 // pred_check_branch
          %272 = sbr.rel (%p270) target = $region28
        $region27: #{tpu_custom_call.1} parent=19 // pred_region
          %s273 = sand.u32 %s21, 1
          %s274 = scalar_lea.sflag [#allocation6], %s273
          %s275 = sand.u32 %s82, 1
          %s276 = smul.addr %s275, 32
          %s277 = scalar_lea.vmem [#allocation5], %s276
          %s278 = smul.u32 4, %s29
          %s280 = ssub.s32 512, 512
          %281 = vsyncadd %s274, %s280
          %s282 = smul.addr %s30, 4
          %s283 = sadd.s32 %s278, %s282
          %s284 = smul.addr %s283, 128
          %s285 = scalar_lea.hbm %s1, %s284
          %s286 = sshll.u32 %s277, 4
          %s287 = int_to_ptr.vmem [resolvable:$true] %s286
          %292 = dma.hbm_to_vmem [thread:$0]  %s285, 512, %s287, %s274, 128, 128, 8
        $region28: #{tpu_custom_call.1} parent=19 // pred_fallthru
          _
        // Predicated region
        $region29: #{tpu_custom_call.1} parent=19 // pred_check
          %p293 = pneg %p120
        $region30: #{tpu_custom_call.1} parent=19 // pred_check_branch
          %295 = sbr.rel (%p293) target = $region32
        $region31: #{tpu_custom_call.1} parent=19 // pred_region
          %s296 = sand.u32 %s21, 1
          %s297 = scalar_lea.sflag [#allocation6], %s296
          %s298 = sand.u32 %s110, 1
          %s299 = smul.addr %s298, 32
          %s300 = scalar_lea.vmem [#allocation7], %s299
          %s301 = smul.u32 4, %s29
          %s303 = ssub.s32 512, 512
          %304 = vsyncadd %s297, %s303
          %s305 = smul.addr %s30, 4
          %s306 = sadd.s32 %s301, %s305
          %s307 = smul.addr %s306, 128
          %s308 = scalar_lea.hbm %s2, %s307
          %s309 = sshll.u32 %s300, 4
          %s310 = int_to_ptr.vmem [resolvable:$true] %s309
          %315 = dma.hbm_to_vmem [thread:$0]  %s308, 512, %s310, %s297, 128, 128, 8
        $region32: #{tpu_custom_call.1} parent=19 // pred_fallthru
          _
        // Predicated region
        $region33: #{tpu_custom_call.1} parent=19 // pred_check
          %p316 = pneg %p174
        $region34: #{tpu_custom_call.1} parent=19 // pred_check_branch
          %318 = sbr.rel (%p316) target = $region36
        $region35: #{tpu_custom_call.1} parent=19 // pred_region
          %p319 = scmp.lt.s32.totalorder %s30, 1
          %s320 = scalar_select %p319, %s30, 1
          %s321 = scalar_lea.vmem %s4, %s320
        $region36: #{tpu_custom_call.1} parent=19 // pred_fallthru
          _
      $region20: #{tpu_custom_call.1} parent=5 // pred_fallthru
        _
      %p322 = scmp.le.s32.totalorder 1, %s21
      %p323 = scmp.lt.s32.totalorder %s21, 3
      %p324 = pnand %p322, %p323
      %p325 = pneg %p324
      // Predicated region
      $region37: #{tpu_custom_call.1} parent=5 // pred_check
        _
      $region38: #{tpu_custom_call.1} parent=5 // pred_check_branch
        %327 = sbr.rel (%p324) target = $region40
      $region39: #{tpu_custom_call.1} parent=5 // pred_region
        %s328 = ssub.s32 %s21, 1
        %s329 = sand.u32 %s57, 1
        %s330 = scalar_lea.sflag [#allocation3], %s329
        %s331 = sand.u32 %s57, 1
        %s332 = smul.addr %s331, 32
        %s333 = scalar_lea.vmem [#allocation2], %s332
        // Predicated region
        $region41: #{tpu_custom_call.1} parent=39 // pred_check
          %p334 = pneg %p70
        $region42: #{tpu_custom_call.1} parent=39 // pred_check_branch
          %336 = sbr.rel (%p334) target = $region44
        $region43: #{tpu_custom_call.1} parent=39 // pred_region
          %337 = dma.done %s330, 512
        $region44: #{tpu_custom_call.1} parent=39 // pred_fallthru
          _
        %s338 = sand.u32 %s26, 1
        %s339 = scalar_lea.sflag [#allocation6], %s338
        %s340 = sand.u32 %s85, 1
        %s341 = smul.addr %s340, 32
        %s342 = scalar_lea.vmem [#allocation5], %s341
        // Predicated region
        $region45: #{tpu_custom_call.1} parent=39 // pred_check
          %p343 = pneg %p98
        $region46: #{tpu_custom_call.1} parent=39 // pred_check_branch
          %345 = sbr.rel (%p343) target = $region48
        $region47: #{tpu_custom_call.1} parent=39 // pred_region
          %346 = dma.done %s339, 512
        $region48: #{tpu_custom_call.1} parent=39 // pred_fallthru
          _
        %s347 = sand.u32 %s26, 1
        %s348 = scalar_lea.sflag [#allocation6], %s347
        %s349 = sand.u32 %s113, 1
        %s350 = smul.addr %s349, 32
        %s351 = scalar_lea.vmem [#allocation7], %s350
        // Predicated region
        $region49: #{tpu_custom_call.1} parent=39 // pred_check
          %p352 = pneg %p126
        $region50: #{tpu_custom_call.1} parent=39 // pred_check_branch
          %354 = sbr.rel (%p352) target = $region52
        $region51: #{tpu_custom_call.1} parent=39 // pred_region
          %355 = dma.done %s348, 512
        $region52: #{tpu_custom_call.1} parent=39 // pred_fallthru
          _
        // Predicated region
        $region53: #{tpu_custom_call.1} parent=39 // pred_check
          %p356 = pneg %p154
        $region54: #{tpu_custom_call.1} parent=39 // pred_check_branch
          %358 = sbr.rel (%p356) target = $region56
        $region55: #{tpu_custom_call.1} parent=39 // pred_region
          %359 = dma.done [#allocation9], 512
        $region56: #{tpu_custom_call.1} parent=39 // pred_fallthru
          _
        %s360 = sand.u32 %s57, 1
        %s361 = scalar_lea.sflag [#allocation3], %s360
        %s362 = sand.u32 %s57, 1
        %s363 = smul.addr %s362, 32
        %s364 = scalar_lea.vmem [#allocation2], %s363
        %p365 = pneg %p70
        %p366 = pneg %p67
        %s367 = sand.u32 %s26, 1
        %s368 = scalar_lea.sflag [#allocation6], %s367
        %s369 = sand.u32 %s85, 1
        %s370 = smul.addr %s369, 32
        %s371 = scalar_lea.vmem [#allocation5], %s370
        %p372 = pneg %p98
        %p373 = pneg %p95
        %s374 = sand.u32 %s26, 1
        %s375 = scalar_lea.sflag [#allocation6], %s374
        %s376 = sand.u32 %s113, 1
        %s377 = smul.addr %s376, 32
        %s378 = scalar_lea.vmem [#allocation7], %s377
        %p379 = pneg %p126
        %p380 = pneg %p123
        %p381 = pneg %p154
        %p382 = pneg %p151
        %p383 = scmp.lt.s32.totalorder %s33, 1
        %s384 = scalar_select %p383, %s33, 1
        %s385 = scalar_lea.vmem %s4, %s384
        %p386 = pneg %p180
        %p387 = pneg %p177
        %p388 = pneg %p210
        %p389 = pneg %p207
        %s390 = sand.u32 %s197, 1
        %s391 = scalar_lea.sflag [#allocation4], %s390
        %s392 = sand.u32 %s197, 1
        %s393 = smul.addr %s392, 8
        %s394 = scalar_lea.vmem [#allocation10], %s393
        %s395 = smul.u32 4, %s32
        %s396 = smul.u32 4, %s32
        %s397 = smul.u32 4, %s32
        %s398 = smul.u32 4, %s32
        %p399 = scmp.lt.s32.totalorder %s33, 1
        %s400 = scalar_select %p399, %s33, 1
        %s401 = scalar_lea.vmem %s4, %s400
        %v402 = vld [vmem:[%s333] sm:$0xff]
        %v403 = vld [vmem:[%s333 + $0x8] sm:$0xff]
        %v404 = vld [vmem:[%s333 + $0x10] sm:$0xff]
        %v405 = vld [vmem:[%s333 + $0x18] sm:$0xff]
        %v406 = vld [vmem:[%s342] sm:$0xff]
        %v407 = vld [vmem:[%s342 + $0x8] sm:$0xff]
        %v408 = vld [vmem:[%s342 + $0x10] sm:$0xff]
        %v409 = vld [vmem:[%s342 + $0x18] sm:$0xff]
        %v410 = vld [vmem:[#allocation8] sm:$0xff]
        %v411 = vld [vmem:[#allocation8 + $0x8] sm:$0xff]
        %v412 = vld [vmem:[#allocation8 + $0x10] sm:$0xff]
        %v413 = vld [vmem:[#allocation8 + $0x18] sm:$0xff]
        %vm414 = vcmask 64512
        %v416 = vsel %vm414, %v402, 0
        %v419 = vsel %vm414, %v406, 0
        %421 = vmatprep.subr.mxu0 0.0
        %422 = vmatpush1.xpose.msra.mxu0 %v419
        %423 = vmatprep.subr.mxu0 0.0
        %424 = vmatpush1.xpose.msra.mxu0 0.0
        %425 = vmatprep.subr.mxu0 0.0
        %426 = vmatpush1.xpose.msra.mxu0 0.0
        %427 = vmatprep.subr.mxu0 0.0
        %428 = vmatpush1.xpose.msra.mxu0 0.0
        %429 = vmatprep.subr.mxu0 0.0
        %430 = vmatpush1.xpose.msra.mxu0 0.0
        %431 = vmatprep.subr.mxu0 0.0
        %432 = vmatpush1.xpose.msra.mxu0 0.0
        %433 = vmatprep.subr.mxu0 0.0
        %434 = vmatpush1.xpose.msra.mxu0 0.0
        %435 = vmatprep.subr.mxu0 0.0
        %436 = vmatpush1.xpose.msra.mxu0 0.0
        %437 = vmatprep.subr.mxu0 0.0
        %438 = vmatpush1.xpose.msra.mxu0 0.0
        %439 = vmatprep.subr.mxu0 0.0
        %440 = vmatpush1.xpose.msra.mxu0 0.0
        %441 = vmatprep.subr.mxu0 0.0
        %442 = vmatpush1.xpose.msra.mxu0 0.0
        %443 = vmatprep.subr.mxu0 0.0
        %444 = vmatpush1.xpose.msra.mxu0 0.0
        %445 = vmatprep.subr.mxu0 0.0
        %446 = vmatpush1.xpose.msra.mxu0 0.0
        %447 = vmatprep.subr.mxu0 0.0
        %448 = vmatpush1.xpose.msra.mxu0 0.0
        %449 = vmatprep.subr.mxu0 0.0
        %450 = vmatpush1.xpose.msra.mxu0 0.0
        %451 = vmatprep.subr.mxu0 0.0
        %452 = vmatpush1.xpose.msra.mxu0 0.0
        %453 = vmatprep.subr.mxu0 0.0
        %454 = vmatpush1.xpose.msra.mxu0 0.0
        %455 = vmatprep.subr.mxu0 0.0
        %456 = vmatpush1.xpose.msra.mxu0 0.0
        %457 = vmatprep.subr.mxu0 0.0
        %458 = vmatpush1.xpose.msra.mxu0 0.0
        %459 = vmatprep.subr.mxu0 0.0
        %460 = vmatpush1.xpose.msra.mxu0 0.0
        %461 = vmatprep.subr.mxu0 0.0
        %462 = vmatpush1.xpose.msra.mxu0 0.0
        %463 = vmatprep.subr.mxu0 0.0
        %464 = vmatpush1.xpose.msra.mxu0 0.0
        %465 = vmatprep.subr.mxu0 0.0
        %466 = vmatpush1.xpose.msra.mxu0 0.0
        %467 = vmatprep.subr.mxu0 0.0
        %468 = vmatpush1.xpose.msra.mxu0 0.0
        %469 = vmatprep.subr.mxu0 0.0
        %470 = vmatpush1.xpose.msra.mxu0 0.0
        %471 = vmatprep.subr.mxu0 0.0
        %472 = vmatpush1.xpose.msra.mxu0 0.0
        %473 = vmatprep.subr.mxu0 0.0
        %474 = vmatpush1.xpose.msra.mxu0 0.0
        %475 = vmatprep.subr.mxu0 0.0
        %476 = vmatpush1.xpose.msra.mxu0 0.0
        %477 = vmatprep.subr.mxu0 0.0
        %478 = vmatpush1.xpose.msra.mxu0 0.0
        %479 = vmatprep.subr.mxu0 0.0
        %480 = vmatpush1.xpose.msra.mxu0 0.0
        %481 = vmatprep.subr.mxu0 0.0
        %482 = vmatpush1.xpose.msra.mxu0 0.0
        %483 = vmatprep.subr.mxu0 0.0
        %484 = vmatpush1.xpose.msra.mxu0 0.0
        %485 = vmatprep.mubr.f32.mxu0 0.0
        %486 = vmatmul.mubr.f32.gmra.mrb[0].mxu0 %v416
        %v487 = vpop.f32.mrb[0].mxu0
        %v488 = vadd.f32 %v410, %v487
        %v489 = vpop.f32.mrb[0].mxu0
        %490 = vdwg.mxu0
        %v492 = vsel %vm414, %v403, 0
        %v495 = vsel %vm414, %v407, 0
        %497 = vmatprep.subr.mxu0 0.0
        %498 = vmatpush1.xpose.msra.mxu0 %v495
        %499 = vmatprep.subr.mxu0 0.0
        %500 = vmatpush1.xpose.msra.mxu0 0.0
        %501 = vmatprep.subr.mxu0 0.0
        %502 = vmatpush1.xpose.msra.mxu0 0.0
        %503 = vmatprep.subr.mxu0 0.0
        %504 = vmatpush1.xpose.msra.mxu0 0.0
        %505 = vmatprep.subr.mxu0 0.0
        %506 = vmatpush1.xpose.msra.mxu0 0.0
        %507 = vmatprep.subr.mxu0 0.0
        %508 = vmatpush1.xpose.msra.mxu0 0.0
        %509 = vmatprep.subr.mxu0 0.0
        %510 = vmatpush1.xpose.msra.mxu0 0.0
        %511 = vmatprep.subr.mxu0 0.0
        %512 = vmatpush1.xpose.msra.mxu0 0.0
        %513 = vmatprep.subr.mxu0 0.0
        %514 = vmatpush1.xpose.msra.mxu0 0.0
        %515 = vmatprep.subr.mxu0 0.0
        %516 = vmatpush1.xpose.msra.mxu0 0.0
        %517 = vmatprep.subr.mxu0 0.0
        %518 = vmatpush1.xpose.msra.mxu0 0.0
        %519 = vmatprep.subr.mxu0 0.0
        %520 = vmatpush1.xpose.msra.mxu0 0.0
        %521 = vmatprep.subr.mxu0 0.0
        %522 = vmatpush1.xpose.msra.mxu0 0.0
        %523 = vmatprep.subr.mxu0 0.0
        %524 = vmatpush1.xpose.msra.mxu0 0.0
        %525 = vmatprep.subr.mxu0 0.0
        %526 = vmatpush1.xpose.msra.mxu0 0.0
        %527 = vmatprep.subr.mxu0 0.0
        %528 = vmatpush1.xpose.msra.mxu0 0.0
        %529 = vmatprep.subr.mxu0 0.0
        %530 = vmatpush1.xpose.msra.mxu0 0.0
        %531 = vmatprep.subr.mxu0 0.0
        %532 = vmatpush1.xpose.msra.mxu0 0.0
        %533 = vmatprep.subr.mxu0 0.0
        %534 = vmatpush1.xpose.msra.mxu0 0.0
        %535 = vmatprep.subr.mxu0 0.0
        %536 = vmatpush1.xpose.msra.mxu0 0.0
        %537 = vmatprep.subr.mxu0 0.0
        %538 = vmatpush1.xpose.msra.mxu0 0.0
        %539 = vmatprep.subr.mxu0 0.0
        %540 = vmatpush1.xpose.msra.mxu0 0.0
        %541 = vmatprep.subr.mxu0 0.0
        %542 = vmatpush1.xpose.msra.mxu0 0.0
        %543 = vmatprep.subr.mxu0 0.0
        %544 = vmatpush1.xpose.msra.mxu0 0.0
        %545 = vmatprep.subr.mxu0 0.0
        %546 = vmatpush1.xpose.msra.mxu0 0.0
        %547 = vmatprep.subr.mxu0 0.0
        %548 = vmatpush1.xpose.msra.mxu0 0.0
        %549 = vmatprep.subr.mxu0 0.0
        %550 = vmatpush1.xpose.msra.mxu0 0.0
        %551 = vmatprep.subr.mxu0 0.0
        %552 = vmatpush1.xpose.msra.mxu0 0.0
        %553 = vmatprep.subr.mxu0 0.0
        %554 = vmatpush1.xpose.msra.mxu0 0.0
        %555 = vmatprep.subr.mxu0 0.0
        %556 = vmatpush1.xpose.msra.mxu0 0.0
        %557 = vmatprep.subr.mxu0 0.0
        %558 = vmatpush1.xpose.msra.mxu0 0.0
        %559 = vmatprep.subr.mxu0 0.0
        %560 = vmatpush1.xpose.msra.mxu0 0.0
        %561 = vmatprep.mubr.f32.mxu0 0.0
        %562 = vmatmul.mubr.f32.gmra.mrb[0].mxu0 %v492
        %v563 = vpop.f32.mrb[0].mxu0
        %v564 = vadd.f32 %v411, %v563
        %v565 = vpop.f32.mrb[0].mxu0
        %566 = vdwg.mxu0
        %v568 = vsel %vm414, %v404, 0
        %v571 = vsel %vm414, %v408, 0
        %573 = vmatprep.subr.mxu0 0.0
        %574 = vmatpush1.xpose.msra.mxu0 %v571
        %575 = vmatprep.subr.mxu0 0.0
        %576 = vmatpush1.xpose.msra.mxu0 0.0
        %577 = vmatprep.subr.mxu0 0.0
        %578 = vmatpush1.xpose.msra.mxu0 0.0
        %579 = vmatprep.subr.mxu0 0.0
        %580 = vmatpush1.xpose.msra.mxu0 0.0
        %581 = vmatprep.subr.mxu0 0.0
        %582 = vmatpush1.xpose.msra.mxu0 0.0
        %583 = vmatprep.subr.mxu0 0.0
        %584 = vmatpush1.xpose.msra.mxu0 0.0
        %585 = vmatprep.subr.mxu0 0.0
        %586 = vmatpush1.xpose.msra.mxu0 0.0
        %587 = vmatprep.subr.mxu0 0.0
        %588 = vmatpush1.xpose.msra.mxu0 0.0
        %589 = vmatprep.subr.mxu0 0.0
        %590 = vmatpush1.xpose.msra.mxu0 0.0
        %591 = vmatprep.subr.mxu0 0.0
        %592 = vmatpush1.xpose.msra.mxu0 0.0
        %593 = vmatprep.subr.mxu0 0.0
        %594 = vmatpush1.xpose.msra.mxu0 0.0
        %595 = vmatprep.subr.mxu0 0.0
        %596 = vmatpush1.xpose.msra.mxu0 0.0
        %597 = vmatprep.subr.mxu0 0.0
        %598 = vmatpush1.xpose.msra.mxu0 0.0
        %599 = vmatprep.subr.mxu0 0.0
        %600 = vmatpush1.xpose.msra.mxu0 0.0
        %601 = vmatprep.subr.mxu0 0.0
        %602 = vmatpush1.xpose.msra.mxu0 0.0
        %603 = vmatprep.subr.mxu0 0.0
        %604 = vmatpush1.xpose.msra.mxu0 0.0
        %605 = vmatprep.subr.mxu0 0.0
        %606 = vmatpush1.xpose.msra.mxu0 0.0
        %607 = vmatprep.subr.mxu0 0.0
        %608 = vmatpush1.xpose.msra.mxu0 0.0
        %609 = vmatprep.subr.mxu0 0.0
        %610 = vmatpush1.xpose.msra.mxu0 0.0
        %611 = vmatprep.subr.mxu0 0.0
        %612 = vmatpush1.xpose.msra.mxu0 0.0
        %613 = vmatprep.subr.mxu0 0.0
        %614 = vmatpush1.xpose.msra.mxu0 0.0
        %615 = vmatprep.subr.mxu0 0.0
        %616 = vmatpush1.xpose.msra.mxu0 0.0
        %617 = vmatprep.subr.mxu0 0.0
        %618 = vmatpush1.xpose.msra.mxu0 0.0
        %619 = vmatprep.subr.mxu0 0.0
        %620 = vmatpush1.xpose.msra.mxu0 0.0
        %621 = vmatprep.subr.mxu0 0.0
        %622 = vmatpush1.xpose.msra.mxu0 0.0
        %623 = vmatprep.subr.mxu0 0.0
        %624 = vmatpush1.xpose.msra.mxu0 0.0
        %625 = vmatprep.subr.mxu0 0.0
        %626 = vmatpush1.xpose.msra.mxu0 0.0
        %627 = vmatprep.subr.mxu0 0.0
        %628 = vmatpush1.xpose.msra.mxu0 0.0
        %629 = vmatprep.subr.mxu0 0.0
        %630 = vmatpush1.xpose.msra.mxu0 0.0
        %631 = vmatprep.subr.mxu0 0.0
        %632 = vmatpush1.xpose.msra.mxu0 0.0
        %633 = vmatprep.subr.mxu0 0.0
        %634 = vmatpush1.xpose.msra.mxu0 0.0
        %635 = vmatprep.subr.mxu0 0.0
        %636 = vmatpush1.xpose.msra.mxu0 0.0
        %637 = vmatprep.mubr.f32.mxu0 0.0
        %638 = vmatmul.mubr.f32.gmra.mrb[0].mxu0 %v568
        %v639 = vpop.f32.mrb[0].mxu0
        %v640 = vadd.f32 %v412, %v639
        %v641 = vpop.f32.mrb[0].mxu0
        %642 = vdwg.mxu0
        %v644 = vsel %vm414, %v405, 0
        %v647 = vsel %vm414, %v409, 0
        %649 = vmatprep.subr.mxu0 0.0
        %650 = vmatpush1.xpose.msra.mxu0 %v647
        %651 = vmatprep.subr.mxu0 0.0
        %652 = vmatpush1.xpose.msra.mxu0 0.0
        %653 = vmatprep.subr.mxu0 0.0
        %654 = vmatpush1.xpose.msra.mxu0 0.0
        %655 = vmatprep.subr.mxu0 0.0
        %656 = vmatpush1.xpose.msra.mxu0 0.0
        %657 = vmatprep.subr.mxu0 0.0
        %658 = vmatpush1.xpose.msra.mxu0 0.0
        %659 = vmatprep.subr.mxu0 0.0
        %660 = vmatpush1.xpose.msra.mxu0 0.0
        %661 = vmatprep.subr.mxu0 0.0
        %662 = vmatpush1.xpose.msra.mxu0 0.0
        %663 = vmatprep.subr.mxu0 0.0
        %664 = vmatpush1.xpose.msra.mxu0 0.0
        %665 = vmatprep.subr.mxu0 0.0
        %666 = vmatpush1.xpose.msra.mxu0 0.0
        %667 = vmatprep.subr.mxu0 0.0
        %668 = vmatpush1.xpose.msra.mxu0 0.0
        %669 = vmatprep.subr.mxu0 0.0
        %670 = vmatpush1.xpose.msra.mxu0 0.0
        %671 = vmatprep.subr.mxu0 0.0
        %672 = vmatpush1.xpose.msra.mxu0 0.0
        %673 = vmatprep.subr.mxu0 0.0
        %674 = vmatpush1.xpose.msra.mxu0 0.0
        %675 = vmatprep.subr.mxu0 0.0
        %676 = vmatpush1.xpose.msra.mxu0 0.0
        %677 = vmatprep.subr.mxu0 0.0
        %678 = vmatpush1.xpose.msra.mxu0 0.0
        %679 = vmatprep.subr.mxu0 0.0
        %680 = vmatpush1.xpose.msra.mxu0 0.0
        %681 = vmatprep.subr.mxu0 0.0
        %682 = vmatpush1.xpose.msra.mxu0 0.0
        %683 = vmatprep.subr.mxu0 0.0
        %684 = vmatpush1.xpose.msra.mxu0 0.0
        %685 = vmatprep.subr.mxu0 0.0
        %686 = vmatpush1.xpose.msra.mxu0 0.0
        %687 = vmatprep.subr.mxu0 0.0
        %688 = vmatpush1.xpose.msra.mxu0 0.0
        %689 = vmatprep.subr.mxu0 0.0
        %690 = vmatpush1.xpose.msra.mxu0 0.0
        %691 = vmatprep.subr.mxu0 0.0
        %692 = vmatpush1.xpose.msra.mxu0 0.0
        %693 = vmatprep.subr.mxu0 0.0
        %694 = vmatpush1.xpose.msra.mxu0 0.0
        %695 = vmatprep.subr.mxu0 0.0
        %696 = vmatpush1.xpose.msra.mxu0 0.0
        %697 = vmatprep.subr.mxu0 0.0
        %698 = vmatpush1.xpose.msra.mxu0 0.0
        %699 = vmatprep.subr.mxu0 0.0
        %700 = vmatpush1.xpose.msra.mxu0 0.0
        %701 = vmatprep.subr.mxu0 0.0
        %702 = vmatpush1.xpose.msra.mxu0 0.0
        %703 = vmatprep.subr.mxu0 0.0
        %704 = vmatpush1.xpose.msra.mxu0 0.0
        %705 = vmatprep.subr.mxu0 0.0
        %706 = vmatpush1.xpose.msra.mxu0 0.0
        %707 = vmatprep.subr.mxu0 0.0
        %708 = vmatpush1.xpose.msra.mxu0 0.0
        %709 = vmatprep.subr.mxu0 0.0
        %710 = vmatpush1.xpose.msra.mxu0 0.0
        %711 = vmatprep.subr.mxu0 0.0
        %712 = vmatpush1.xpose.msra.mxu0 0.0
        %713 = vmatprep.mubr.f32.mxu0 0.0
        %714 = vmatmul.mubr.f32.gmra.mrb[0].mxu0 %v644
        %v715 = vpop.f32.mrb[0].mxu0
        %v716 = vadd.f32 %v413, %v715
        %v717 = vpop.f32.mrb[0].mxu0
        %718 = vdwg.mxu0
        %v719 = vld [vmem:[%s401] sm:$0x1]
        %v721 = vlaneseq
        %v722 = vshrl.u32 %v721, 7
        %v723 = vsub.s32 0, %v722
        %v724 = vrot.slane %v719, %v723
        %v726 = vadd.f32 %v488, %v724
        %v727 = vadd.f32 %v564, %v724
        %v728 = vadd.f32 %v640, %v724
        %v729 = vadd.f32 %v716, %v724
        %v730 = vsel %vm414, %v726, -inf
        %731 = vmax.xlane.f32.xlu0 %v730
        %v732 = vpop.xlane.xlu0 %731
        %v733 = vsel %vm414, %v727, -inf
        %734 = vmax.xlane.f32.xlu0 %v733
        %v735 = vpop.xlane.xlu0 %734
        %v736 = vsel %vm414, %v728, -inf
        %737 = vmax.xlane.f32.xlu0 %v736
        %v738 = vpop.xlane.xlu0 %737
        %v739 = vsel %vm414, %v729, -inf
        %740 = vmax.xlane.f32.xlu0 %v739
        %v741 = vpop.xlane.xlu0 %740
        %v742 = vsub.f32 %v726, %v732
        %v743 = vsub.f32 %v727, %v735
        %v744 = vsub.f32 %v728, %v738
        %v745 = vsub.f32 %v729, %v741
        %v746 = vmul.f32 %v742, 1.442695
        %v747 = vpow.pop %v746
        %v748 = vmul.f32 %v743, 1.442695
        %v749 = vpow.pop %v748
        %v750 = vmul.f32 %v744, 1.442695
        %v751 = vpow.pop %v750
        %v752 = vmul.f32 %v745, 1.442695
        %v753 = vpow.pop %v752
        %v754 = vsel %vm414, %v747, 0.0
        %755 = vadd.xlane.f32.xlu0 %v754
        %v756 = vpop.xlane.xlu0 %755
        %v757 = vsel %vm414, %v749, 0.0
        %758 = vadd.xlane.f32.xlu0 %v757
        %v759 = vpop.xlane.xlu0 %758
        %v760 = vsel %vm414, %v751, 0.0
        %761 = vadd.xlane.f32.xlu0 %v760
        %v762 = vpop.xlane.xlu0 %761
        %v763 = vsel %vm414, %v753, 0.0
        %764 = vadd.xlane.f32.xlu0 %v763
        %v765 = vpop.xlane.xlu0 %764
        %v766 = vrcp.pop %v756
        %v767 = vrcp.pop %v759
        %v768 = vrcp.pop %v762
        %v769 = vrcp.pop %v765
        %v770 = vmul.f32 %v747, %v766
        %v771 = vmul.f32 %v749, %v767
        %v772 = vmul.f32 %v751, %v768
        %v773 = vmul.f32 %v753, %v769
        %v774 = vld [vmem:[%s351] sm:$0xff]
        %v775 = vld [vmem:[%s351 + $0x8] sm:$0xff]
        %v776 = vld [vmem:[%s351 + $0x10] sm:$0xff]
        %v777 = vld [vmem:[%s351 + $0x18] sm:$0xff]
        %v779 = vsel %vm414, %v770, 0
        %781 = vmatprep.subr.mxu0 0.0
        %782 = vmatpush1.msra.mxu0 %v774
        %783 = vmatprep.subr.mxu0 0.0
        %784 = vmatpush1.msra.mxu0 0.0
        %785 = vmatprep.subr.mxu0 0.0
        %786 = vmatpush1.msra.mxu0 0.0
        %787 = vmatprep.subr.mxu0 0.0
        %788 = vmatpush1.msra.mxu0 0.0
        %789 = vmatprep.subr.mxu0 0.0
        %790 = vmatpush1.msra.mxu0 0.0
        %791 = vmatprep.subr.mxu0 0.0
        %792 = vmatpush1.msra.mxu0 0.0
        %793 = vmatprep.subr.mxu0 0.0
        %794 = vmatpush1.msra.mxu0 0.0
        %795 = vmatprep.subr.mxu0 0.0
        %796 = vmatpush1.msra.mxu0 0.0
        %797 = vmatprep.subr.mxu0 0.0
        %798 = vmatpush1.msra.mxu0 0.0
        %799 = vmatprep.subr.mxu0 0.0
        %800 = vmatpush1.msra.mxu0 0.0
        %801 = vmatprep.subr.mxu0 0.0
        %802 = vmatpush1.msra.mxu0 0.0
        %803 = vmatprep.subr.mxu0 0.0
        %804 = vmatpush1.msra.mxu0 0.0
        %805 = vmatprep.subr.mxu0 0.0
        %806 = vmatpush1.msra.mxu0 0.0
        %807 = vmatprep.subr.mxu0 0.0
        %808 = vmatpush1.msra.mxu0 0.0
        %809 = vmatprep.subr.mxu0 0.0
        %810 = vmatpush1.msra.mxu0 0.0
        %811 = vmatprep.subr.mxu0 0.0
        %812 = vmatpush1.msra.mxu0 0.0
        %813 = vmatprep.subr.mxu0 0.0
        %814 = vmatpush1.msra.mxu0 0.0
        %815 = vmatprep.subr.mxu0 0.0
        %816 = vmatpush1.msra.mxu0 0.0
        %817 = vmatprep.subr.mxu0 0.0
        %818 = vmatpush1.msra.mxu0 0.0
        %819 = vmatprep.subr.mxu0 0.0
        %820 = vmatpush1.msra.mxu0 0.0
        %821 = vmatprep.subr.mxu0 0.0
        %822 = vmatpush1.msra.mxu0 0.0
        %823 = vmatprep.subr.mxu0 0.0
        %824 = vmatpush1.msra.mxu0 0.0
        %825 = vmatprep.subr.mxu0 0.0
        %826 = vmatpush1.msra.mxu0 0.0
        %827 = vmatprep.subr.mxu0 0.0
        %828 = vmatpush1.msra.mxu0 0.0
        %829 = vmatprep.subr.mxu0 0.0
        %830 = vmatpush1.msra.mxu0 0.0
        %831 = vmatprep.subr.mxu0 0.0
        %832 = vmatpush1.msra.mxu0 0.0
        %833 = vmatprep.subr.mxu0 0.0
        %834 = vmatpush1.msra.mxu0 0.0
        %835 = vmatprep.subr.mxu0 0.0
        %836 = vmatpush1.msra.mxu0 0.0
        %837 = vmatprep.subr.mxu0 0.0
        %838 = vmatpush1.msra.mxu0 0.0
        %839 = vmatprep.subr.mxu0 0.0
        %840 = vmatpush1.msra.mxu0 0.0
        %841 = vmatprep.subr.mxu0 0.0
        %842 = vmatpush1.msra.mxu0 0.0
        %843 = vmatprep.subr.mxu0 0.0
        %844 = vmatpush1.msra.mxu0 0.0
        %845 = vmatprep.mubr.f32.mxu0 0.0
        %846 = vmatmul.mubr.f32.gmra.mrb[0].mxu0 %v779
        %v847 = vpop.f32.mrb[0].mxu0
        %v848 = vadd.f32 0.0, %v847
        %v849 = vpop.f32.mrb[0].mxu0
        %850 = vdwg.mxu0
        %v852 = vsel %vm414, %v771, 0
        %854 = vmatprep.subr.mxu0 0.0
        %855 = vmatpush1.msra.mxu0 %v775
        %856 = vmatprep.subr.mxu0 0.0
        %857 = vmatpush1.msra.mxu0 0.0
        %858 = vmatprep.subr.mxu0 0.0
        %859 = vmatpush1.msra.mxu0 0.0
        %860 = vmatprep.subr.mxu0 0.0
        %861 = vmatpush1.msra.mxu0 0.0
        %862 = vmatprep.subr.mxu0 0.0
        %863 = vmatpush1.msra.mxu0 0.0
        %864 = vmatprep.subr.mxu0 0.0
        %865 = vmatpush1.msra.mxu0 0.0
        %866 = vmatprep.subr.mxu0 0.0
        %867 = vmatpush1.msra.mxu0 0.0
        %868 = vmatprep.subr.mxu0 0.0
        %869 = vmatpush1.msra.mxu0 0.0
        %870 = vmatprep.subr.mxu0 0.0
        %871 = vmatpush1.msra.mxu0 0.0
        %872 = vmatprep.subr.mxu0 0.0
        %873 = vmatpush1.msra.mxu0 0.0
        %874 = vmatprep.subr.mxu0 0.0
        %875 = vmatpush1.msra.mxu0 0.0
        %876 = vmatprep.subr.mxu0 0.0
        %877 = vmatpush1.msra.mxu0 0.0
        %878 = vmatprep.subr.mxu0 0.0
        %879 = vmatpush1.msra.mxu0 0.0
        %880 = vmatprep.subr.mxu0 0.0
        %881 = vmatpush1.msra.mxu0 0.0
        %882 = vmatprep.subr.mxu0 0.0
        %883 = vmatpush1.msra.mxu0 0.0
        %884 = vmatprep.subr.mxu0 0.0
        %885 = vmatpush1.msra.mxu0 0.0
        %886 = vmatprep.subr.mxu0 0.0
        %887 = vmatpush1.msra.mxu0 0.0
        %888 = vmatprep.subr.mxu0 0.0
        %889 = vmatpush1.msra.mxu0 0.0
        %890 = vmatprep.subr.mxu0 0.0
        %891 = vmatpush1.msra.mxu0 0.0
        %892 = vmatprep.subr.mxu0 0.0
        %893 = vmatpush1.msra.mxu0 0.0
        %894 = vmatprep.subr.mxu0 0.0
        %895 = vmatpush1.msra.mxu0 0.0
        %896 = vmatprep.subr.mxu0 0.0
        %897 = vmatpush1.msra.mxu0 0.0
        %898 = vmatprep.subr.mxu0 0.0
        %899 = vmatpush1.msra.mxu0 0.0
        %900 = vmatprep.subr.mxu0 0.0
        %901 = vmatpush1.msra.mxu0 0.0
        %902 = vmatprep.subr.mxu0 0.0
        %903 = vmatpush1.msra.mxu0 0.0
        %904 = vmatprep.subr.mxu0 0.0
        %905 = vmatpush1.msra.mxu0 0.0
        %906 = vmatprep.subr.mxu0 0.0
        %907 = vmatpush1.msra.mxu0 0.0
        %908 = vmatprep.subr.mxu0 0.0
        %909 = vmatpush1.msra.mxu0 0.0
        %910 = vmatprep.subr.mxu0 0.0
        %911 = vmatpush1.msra.mxu0 0.0
        %912 = vmatprep.subr.mxu0 0.0
        %913 = vmatpush1.msra.mxu0 0.0
        %914 = vmatprep.subr.mxu0 0.0
        %915 = vmatpush1.msra.mxu0 0.0
        %916 = vmatprep.subr.mxu0 0.0
        %917 = vmatpush1.msra.mxu0 0.0
        %918 = vmatprep.mubr.f32.mxu0 0.0
        %919 = vmatmul.mubr.f32.gmra.mrb[0].mxu0 %v852
        %v920 = vpop.f32.mrb[0].mxu0
        %v921 = vadd.f32 0.0, %v920
        %v922 = vpop.f32.mrb[0].mxu0
        %923 = vdwg.mxu0
        %v925 = vsel %vm414, %v772, 0
        %927 = vmatprep.subr.mxu0 0.0
        %928 = vmatpush1.msra.mxu0 %v776
        %929 = vmatprep.subr.mxu0 0.0
        %930 = vmatpush1.msra.mxu0 0.0
        %931 = vmatprep.subr.mxu0 0.0
        %932 = vmatpush1.msra.mxu0 0.0
        %933 = vmatprep.subr.mxu0 0.0
        %934 = vmatpush1.msra.mxu0 0.0
        %935 = vmatprep.subr.mxu0 0.0
        %936 = vmatpush1.msra.mxu0 0.0
        %937 = vmatprep.subr.mxu0 0.0
        %938 = vmatpush1.msra.mxu0 0.0
        %939 = vmatprep.subr.mxu0 0.0
        %940 = vmatpush1.msra.mxu0 0.0
        %941 = vmatprep.subr.mxu0 0.0
        %942 = vmatpush1.msra.mxu0 0.0
        %943 = vmatprep.subr.mxu0 0.0
        %944 = vmatpush1.msra.mxu0 0.0
        %945 = vmatprep.subr.mxu0 0.0
        %946 = vmatpush1.msra.mxu0 0.0
        %947 = vmatprep.subr.mxu0 0.0
        %948 = vmatpush1.msra.mxu0 0.0
        %949 = vmatprep.subr.mxu0 0.0
        %950 = vmatpush1.msra.mxu0 0.0
        %951 = vmatprep.subr.mxu0 0.0
        %952 = vmatpush1.msra.mxu0 0.0
        %953 = vmatprep.subr.mxu0 0.0
        %954 = vmatpush1.msra.mxu0 0.0
        %955 = vmatprep.subr.mxu0 0.0
        %956 = vmatpush1.msra.mxu0 0.0
        %957 = vmatprep.subr.mxu0 0.0
        %958 = vmatpush1.msra.mxu0 0.0
        %959 = vmatprep.subr.mxu0 0.0
        %960 = vmatpush1.msra.mxu0 0.0
        %961 = vmatprep.subr.mxu0 0.0
        %962 = vmatpush1.msra.mxu0 0.0
        %963 = vmatprep.subr.mxu0 0.0
        %964 = vmatpush1.msra.mxu0 0.0
        %965 = vmatprep.subr.mxu0 0.0
        %966 = vmatpush1.msra.mxu0 0.0
        %967 = vmatprep.subr.mxu0 0.0
        %968 = vmatpush1.msra.mxu0 0.0
        %969 = vmatprep.subr.mxu0 0.0
        %970 = vmatpush1.msra.mxu0 0.0
        %971 = vmatprep.subr.mxu0 0.0
        %972 = vmatpush1.msra.mxu0 0.0
        %973 = vmatprep.subr.mxu0 0.0
        %974 = vmatpush1.msra.mxu0 0.0
        %975 = vmatprep.subr.mxu0 0.0
        %976 = vmatpush1.msra.mxu0 0.0
        %977 = vmatprep.subr.mxu0 0.0
        %978 = vmatpush1.msra.mxu0 0.0
        %979 = vmatprep.subr.mxu0 0.0
        %980 = vmatpush1.msra.mxu0 0.0
        %981 = vmatprep.subr.mxu0 0.0
        %982 = vmatpush1.msra.mxu0 0.0
        %983 = vmatprep.subr.mxu0 0.0
        %984 = vmatpush1.msra.mxu0 0.0
        %985 = vmatprep.subr.mxu0 0.0
        %986 = vmatpush1.msra.mxu0 0.0
        %987 = vmatprep.subr.mxu0 0.0
        %988 = vmatpush1.msra.mxu0 0.0
        %989 = vmatprep.subr.mxu0 0.0
        %990 = vmatpush1.msra.mxu0 0.0
        %991 = vmatprep.mubr.f32.mxu0 0.0
        %992 = vmatmul.mubr.f32.gmra.mrb[0].mxu0 %v925
        %v993 = vpop.f32.mrb[0].mxu0
        %v994 = vadd.f32 0.0, %v993
        %v995 = vpop.f32.mrb[0].mxu0
        %996 = vdwg.mxu0
        %v998 = vsel %vm414, %v773, 0
        %1000 = vmatprep.subr.mxu0 0.0
        %1001 = vmatpush1.msra.mxu0 %v777
        %1002 = vmatprep.subr.mxu0 0.0
        %1003 = vmatpush1.msra.mxu0 0.0
        %1004 = vmatprep.subr.mxu0 0.0
        %1005 = vmatpush1.msra.mxu0 0.0
        %1006 = vmatprep.subr.mxu0 0.0
        %1007 = vmatpush1.msra.mxu0 0.0
        %1008 = vmatprep.subr.mxu0 0.0
        %1009 = vmatpush1.msra.mxu0 0.0
        %1010 = vmatprep.subr.mxu0 0.0
        %1011 = vmatpush1.msra.mxu0 0.0
        %1012 = vmatprep.subr.mxu0 0.0
        %1013 = vmatpush1.msra.mxu0 0.0
        %1014 = vmatprep.subr.mxu0 0.0
        %1015 = vmatpush1.msra.mxu0 0.0
        %1016 = vmatprep.subr.mxu0 0.0
        %1017 = vmatpush1.msra.mxu0 0.0
        %1018 = vmatprep.subr.mxu0 0.0
        %1019 = vmatpush1.msra.mxu0 0.0
        %1020 = vmatprep.subr.mxu0 0.0
        %1021 = vmatpush1.msra.mxu0 0.0
        %1022 = vmatprep.subr.mxu0 0.0
        %1023 = vmatpush1.msra.mxu0 0.0
        %1024 = vmatprep.subr.mxu0 0.0
        %1025 = vmatpush1.msra.mxu0 0.0
        %1026 = vmatprep.subr.mxu0 0.0
        %1027 = vmatpush1.msra.mxu0 0.0
        %1028 = vmatprep.subr.mxu0 0.0
        %1029 = vmatpush1.msra.mxu0 0.0
        %1030 = vmatprep.subr.mxu0 0.0
        %1031 = vmatpush1.msra.mxu0 0.0
        %1032 = vmatprep.subr.mxu0 0.0
        %1033 = vmatpush1.msra.mxu0 0.0
        %1034 = vmatprep.subr.mxu0 0.0
        %1035 = vmatpush1.msra.mxu0 0.0
        %1036 = vmatprep.subr.mxu0 0.0
        %1037 = vmatpush1.msra.mxu0 0.0
        %1038 = vmatprep.subr.mxu0 0.0
        %1039 = vmatpush1.msra.mxu0 0.0
        %1040 = vmatprep.subr.mxu0 0.0
        %1041 = vmatpush1.msra.mxu0 0.0
        %1042 = vmatprep.subr.mxu0 0.0
        %1043 = vmatpush1.msra.mxu0 0.0
        %1044 = vmatprep.subr.mxu0 0.0
        %1045 = vmatpush1.msra.mxu0 0.0
        %1046 = vmatprep.subr.mxu0 0.0
        %1047 = vmatpush1.msra.mxu0 0.0
        %1048 = vmatprep.subr.mxu0 0.0
        %1049 = vmatpush1.msra.mxu0 0.0
        %1050 = vmatprep.subr.mxu0 0.0
        %1051 = vmatpush1.msra.mxu0 0.0
        %1052 = vmatprep.subr.mxu0 0.0
        %1053 = vmatpush1.msra.mxu0 0.0
        %1054 = vmatprep.subr.mxu0 0.0
        %1055 = vmatpush1.msra.mxu0 0.0
        %1056 = vmatprep.subr.mxu0 0.0
        %1057 = vmatpush1.msra.mxu0 0.0
        %1058 = vmatprep.subr.mxu0 0.0
        %1059 = vmatpush1.msra.mxu0 0.0
        %1060 = vmatprep.subr.mxu0 0.0
        %1061 = vmatpush1.msra.mxu0 0.0
        %1062 = vmatprep.subr.mxu0 0.0
        %1063 = vmatpush1.msra.mxu0 0.0
        %1064 = vmatprep.mubr.f32.mxu0 0.0
        %1065 = vmatmul.mubr.f32.gmra.mrb[0].mxu0 %v998
        %v1066 = vpop.f32.mrb[0].mxu0
        %v1067 = vadd.f32 0.0, %v1066
        %v1068 = vpop.f32.mrb[0].mxu0
        %1069 = vdwg.mxu0
        %1070 = vst.msk [vmem:[%s394] sm:$0xff] %vm414, %v848
        %1072 = vrot.lane.b32.xlu0 %v921, 8
        %v1073 = vpop.permute.xlu0 %1072
        %vm1075 = vcmask 130112
        %1076 = vst.msk [vmem:[%s394] sm:$0xff] %vm1075, %v1073
        %1078 = vrot.lane.b32.xlu0 %v994, 16
        %v1079 = vpop.permute.xlu0 %1078
        %vm1081 = vcmask 195712
        %1082 = vst.msk [vmem:[%s394] sm:$0xff] %vm1081, %v1079
        %1084 = vrot.lane.b32.xlu0 %v1067, 24
        %v1085 = vpop.permute.xlu0 %1084
        %vm1087 = vcmask 261312
        %1088 = vst.msk [vmem:[%s394] sm:$0xff] %vm1087, %v1085
        %s1089 = sand.u32 %s197, 1
        %s1090 = scalar_lea.sflag [#allocation4], %s1089
        %s1091 = sand.u32 %s197, 1
        %s1092 = smul.addr %s1091, 8
        %s1093 = scalar_lea.vmem [#allocation10], %s1092
        // Predicated region
        $region57: #{tpu_custom_call.1} parent=39 // pred_check
          %p1094 = pneg %p207
        $region58: #{tpu_custom_call.1} parent=39 // pred_check_branch
          %1096 = sbr.rel (%p1094) target = $region60
        $region59: #{tpu_custom_call.1} parent=39 // pred_region
          %s1098 = ssub.s32 128, 128
          %1099 = vsyncadd %s1090, %s1098
          %s1100 = sadd.s32 %s32, %s31
          %s1101 = sadd.s32 %s1100, %s33
          %s1102 = smul.addr %s1101, 128
          %s1103 = scalar_lea.hbm %s5, %s1102
          %s1105 = sshll.u32 %s1093, 4
          %s1106 = int_to_ptr.vmem [resolvable:$true] %s1105
          %1108 = dma.vmem_to_hbm [thread:$0]  %s1106, 128, %s1103, %s1090
        $region60: #{tpu_custom_call.1} parent=39 // pred_fallthru
          _
      $region40: #{tpu_custom_call.1} parent=5 // pred_fallthru
        _
      %p1109 = scmp.le.s32.totalorder 2, %s21
      // Predicated region
      $region61: #{tpu_custom_call.1} parent=5 // pred_check
        %p1110 = pneg %p1109
      $region62: #{tpu_custom_call.1} parent=5 // pred_check_branch
        %1112 = sbr.rel (%p1110) target = $region64
      $region63: #{tpu_custom_call.1} parent=5 // pred_region
        %s1113 = ssub.s32 %s21, 2
        // Predicated region
        $region65: #{tpu_custom_call.1} parent=63 // pred_check
          %p1114 = pneg %p213
        $region66: #{tpu_custom_call.1} parent=63 // pred_check_branch
          %1116 = sbr.rel (%p1114) target = $region68
        $region67: #{tpu_custom_call.1} parent=63 // pred_region
          %s1117 = sand.u32 %s198, 1
          %s1118 = scalar_lea.sflag [#allocation4], %s1117
          %s1119 = sand.u32 %s198, 1
          %s1120 = smul.addr %s1119, 8
          %s1121 = scalar_lea.vmem [#allocation10], %s1120
          %1122 = dma.done %s1118, 128
        $region68: #{tpu_custom_call.1} parent=63 // pred_fallthru
          _
      $region64: #{tpu_custom_call.1} parent=5 // pred_fallthru
        _
    $region6: #{tpu_custom_call.1} parent=1 // loop_footer
      %s25 = sadd.s32 1, %s21
    $region7: #{tpu_custom_call.1} parent=1 // loop_footer_branch
      %20 = sbr.rel target = $region3
    $region8: #{tpu_custom_call.1} parent=1 // loop_exit
      _
    %1123 = vsyncpa [#allocation3], 1
    %s1124 = scalar_lea.sflag [#allocation3], 1
    %1125 = vsyncpa %s1124, 1
    %1126 = vsyncpa [#allocation6], 1
    %s1127 = scalar_lea.sflag [#allocation6], 1
    %1128 = vsyncpa %s1127, 1
    %1129 = vsyncpa [#allocation9], 1
    %1130 = vsyncpa [#allocation4], 1
    %s1131 = scalar_lea.sflag [#allocation4], 1
    %1132 = vsyncpa %s1131, 1

</llo_original>
